<compile_context>
chip_gen: v7x
topology: tpu7x:2x2x1
jax: 0.10.0
libtpu: 0.0.40
codegen_flags: <defaults>
</compile_context>

<pallas_src>
import functools

import jax
import jax.numpy as jnp
from jax import lax
from jax.experimental import pallas as pl
from jax.experimental.pallas import tpu as pltpu


# ---------------------------------------------------------------------------
# Noise schedules (tiny precompute, plain JAX -- matches ddpm_schedules).
# ---------------------------------------------------------------------------
def ddpm_schedules(beta1: float, beta2: float, T: int):
    assert beta1 < beta2 < 1.0, "beta1 and beta2 must be in (0, 1)"
    beta_t = (beta2 - beta1) * jnp.arange(0, T + 1, dtype=jnp.float32) / T + beta1
    alpha_t = jnp.exp(jnp.cumsum(jnp.log(1.0 - beta_t)))
    return {
        "beta_t": beta_t,
        "alpha_t": alpha_t,
        "sqrtab": jnp.sqrt(alpha_t),
        "sqrtmab": jnp.sqrt(1.0 - alpha_t),
    }


def _round_up(v: int, m: int) -> int:
    return ((v + m - 1) // m) * m


def _block_diag2(w):
    """[[w, 0], [0, w]] so one matmul handles a batch pair independently."""
    r, c = w.shape
    out = jnp.zeros((2 * r, 2 * c), w.dtype)
    out = out.at[:r, :c].set(w)
    out = out.at[r:, c:].set(w)
    return out


def _hidden_bf16_ok() -> bool:
    """bf16 VPU/EUP path exists on v6e/v7x; v5e and older gain nothing from it."""
    try:
        kind = jax.devices()[0].device_kind.lower()
    except Exception:
        return False
    return ("v6" in kind) or ("v7" in kind) or ("7x" in kind)


# ---------------------------------------------------------------------------
# Fused kernel: noising + gt MLP + per-batch-pair MSE partial sum.
# ---------------------------------------------------------------------------
def _fused_kernel(scal_ref,                     # SMEM (3, B): sqrt(a), sqrt(1-a), t/n_T
                  x_ref, eps_ref,               # VMEM (2C, tile) bf16
                  w1_ref, w1t_ref, b1_ref,      # VMEM (2Hd, 2C), (2Hd, 1), (2Hd, 1)
                  w2_ref, b2_ref,               # VMEM (2C, 2Hd), (2C, 1)
                  out_ref,                      # VMEM (1, 1) per-pair partial loss
                  acc_ref,                      # VMEM (2C, tile) f32 scratch
                  *, C, Hd, tile, hw_valid, batch_valid, bf16_hidden):
    q = pl.program_id(0)                        # batch-pair index ("parallel")
    p = pl.program_id(1)                        # pixel-tile index ("arbitrary")

    @pl.when(p == 0)
    def _():
        acc_ref[...] = jnp.zeros_like(acc_ref)

    b_lo = 2 * q
    b_hi = 2 * q + 1
    sa0 = scal_ref[0, b_lo]
    sa1 = scal_ref[0, b_hi]
    sm0 = scal_ref[1, b_lo]
    sm1 = scal_ref[1, b_hi]
    tn0 = scal_ref[2, b_lo]
    tn1 = scal_ref[2, b_hi]

    # Per-sublane noising scales: rows [0,C) belong to batch 2q, rows [C,2C) to 2q+1.
    row_c = lax.broadcasted_iota(jnp.int32, (2 * C, 1), 0)
    lo_half = row_c < C
    sa = jnp.where(lo_half, sa0, sa1)           # (2C, 1)
    sm = jnp.where(lo_half, sm0, sm1)           # (2C, 1)

    x = x_ref[...].astype(jnp.float32)          # (2C, tile)
    eps = eps_ref[...].astype(jnp.float32)      # (2C, tile)
    z = sa * x + sm * eps                       # forward noising, stays in VMEM

    # gt: per-pixel 2-layer MLP; block-diagonal weights handle both pair members.
    # Time feature folded into the bias (no concat/repeat of a feat tensor).
    row_h = lax.broadcasted_iota(jnp.int32, (2 * Hd, 1), 0)
    tn = jnp.where(row_h < Hd, tn0, tn1)                                   # (2Hd, 1)
    bias = b1_ref[...] + tn * w1t_ref[...]                                 # (2Hd, 1)

    h = jnp.dot(w1_ref[...], z, preferred_element_type=jnp.float32) + bias  # (2Hd, tile)
    if bf16_hidden:
        h = h.astype(jnp.bfloat16)              # bf16 VPU/EUP on v6e/v7x
    c_gelu = 0.7978845608028654
    h = 0.5 * h * (1.0 + jnp.tanh(c_gelu * (h + 0.044715 * h * h * h)))    # tanh-GELU
    pred = jnp.dot(w2_ref[...], h, preferred_element_type=jnp.float32) + b2_ref[...]

    # MSE partial: accumulate element-wise (no per-step cross-lane reduce).
    d = eps - pred                              # (2C, tile)
    if hw_valid is not None:                    # mask lane padding of H*W
        lane = lax.broadcasted_iota(jnp.int32, (1, tile), 1) + p * tile
        d = jnp.where(lane < hw_valid, d, 0.0)
    if batch_valid is not None:                 # mask the padded batch (odd B)
        keep = lo_half | (b_hi < batch_valid)
        d = jnp.where(keep, d, 0.0)
    acc_ref[...] += d * d

    @pl.when(p == pl.num_programs(1) - 1)
    def _():
        per_row = jnp.sum(acc_ref[...], axis=1, keepdims=True)   # (2C, 1) lane reduce
        out_ref[...] = jnp.sum(per_row, axis=0, keepdims=True)   # (1, 1)  sublane reduce


_MAX_TILE = 8192          # lanes; (2C, tile) bf16 blocks + (2Hd, tile) hidden stay << VMEM


def ddpm_fused_loss(x, eps, scal, w1p, w1time, b1, w2, b2):
    """x, eps: (B, C, H, W) f32; scal: (3, B) f32. Returns scalar mean((eps - gt(z_t))^2)."""
    B, C, Hh, Ww = x.shape
    HW = Hh * Ww
    Hd = w1p.shape[0]

    bf16_hidden = _hidden_bf16_ok()

    # --- pair batches so every input block fills all 8 sublanes ------------------
    B_pad = _round_up(B, 2)
    batch_valid = B if B_pad != B else None
    xf = x.reshape(B, C, HW)
    ef = eps.reshape(B, C, HW)
    scalp = scal
    if B_pad != B:
        xf = jnp.pad(xf, ((0, B_pad - B), (0, 0), (0, 0)))
        ef = jnp.pad(ef, ((0, B_pad - B), (0, 0), (0, 0)))
        scalp = jnp.pad(scal, ((0, 0), (0, B_pad - B)))
    n_pairs = B_pad // 2

    # bf16 inputs halve HBM traffic; kernel casts back up and accumulates in f32.
    xq = xf.reshape(n_pairs, 2 * C, HW).astype(jnp.bfloat16)
    eq = ef.reshape(n_pairs, 2 * C, HW).astype(jnp.bfloat16)

    # --- lane-dense pixel tiling: pad H*W to a 128 multiple, use big tiles --------
    hw128 = _round_up(HW, 128)
    tile = hw128 if hw128 <= _MAX_TILE else _MAX_TILE
    if hw128 > _MAX_TILE:
        for cand in range(_MAX_TILE, 1023, -128):   # prefer an exact divisor
            if hw128 % cand == 0:
                tile = cand
                break
    HW_pad = _round_up(HW, tile)
    n_tiles = HW_pad // tile
    hw_valid = HW if HW_pad != HW else None
    if HW_pad != HW:
        xq = jnp.pad(xq, ((0, 0), (0, 0), (0, HW_pad - HW)))
        eq = jnp.pad(eq, ((0, 0), (0, 0), (0, HW_pad - HW)))

    # --- block-diagonal gt weights so one grid step serves both pair members -----
    w1_blk = _block_diag2(w1p)                      # (2Hd, 2C)
    w2_blk = _block_diag2(w2)                       # (2C, 2Hd)
    if bf16_hidden:
        w2_blk = w2_blk.astype(jnp.bfloat16)
    b1_2 = jnp.concatenate([b1, b1], axis=0)        # (2Hd, 1)
    w1t_2 = jnp.concatenate([w1time, w1time], axis=0)
    b2_2 = jnp.concatenate([b2, b2], axis=0)        # (2C, 1)

    kernel = functools.partial(_fused_kernel, C=C, Hd=Hd, tile=tile,
                               hw_valid=hw_valid, batch_valid=batch_valid,
                               bf16_hidden=bf16_hidden)

    grid_spec = pltpu.PrefetchScalarGridSpec(
        num_scalar_prefetch=1,                       # scal -> SMEM, indexed by batch id
        grid=(n_pairs, n_tiles),
        in_specs=[
            pl.BlockSpec((None, 2 * C, tile), lambda q, p, s: (q, 0, p)),   # x pair tile
            pl.BlockSpec((None, 2 * C, tile), lambda q, p, s: (q, 0, p)),   # eps pair tile
            pl.BlockSpec((2 * Hd, 2 * C), lambda q, p, s: (0, 0)),          # W1 (resident)
            pl.BlockSpec((2 * Hd, 1), lambda q, p, s: (0, 0)),              # W1 time column
            pl.BlockSpec((2 * Hd, 1), lambda q, p, s: (0, 0)),              # b1
            pl.BlockSpec((2 * C, 2 * Hd), lambda q, p, s: (0, 0)),          # W2
            pl.BlockSpec((2 * C, 1), lambda q, p, s: (0, 0)),               # b2
        ],
        out_specs=pl.BlockSpec((1, 1), lambda q, p, s: (q, 0)),             # per-pair partial
        scratch_shapes=[pltpu.VMEM((2 * C, tile), jnp.float32)],            # running d^2 sum
    )

    partials = pl.pallas_call(
        kernel,
        out_shape=jax.ShapeDtypeStruct((n_pairs, 1), jnp.float32),
        grid_spec=grid_spec,
        compiler_params=pltpu.CompilerParams(
            # Batch-pair axis is independent (megacore on v7x); pixel axis is the
            # reduction carried in the scratch accumulator.
            dimension_semantics=("parallel", "arbitrary"),
            vmem_limit_bytes=32 * 1024 * 1024,
        ),
    )(scalp, xq, eq, w1_blk, w1t_2, b1_2, w2_blk, b2_2)

    return jnp.sum(partials) * (1.0 / float(B * C * HW))


# ---------------------------------------------------------------------------
# DDPM module (JAX wrapper around the fused kernel)
# ---------------------------------------------------------------------------
class DDPM:
    def __init__(self, betas, n_T, in_channels=4, hidden=32, key=None):
        sched = ddpm_schedules(betas[0], betas[1], n_T)
        self.beta_t = sched["beta_t"]
        self.alpha_t = sched["alpha_t"]
        self.sqrtab = sched["sqrtab"]
        self.sqrtmab = sched["sqrtmab"]
        self.n_T = n_T
        if key is None:
            key = jax.random.PRNGKey(0)
        k1, k2, k3 = jax.random.split(key, 3)
        # Synthetic `gt` parameters, stored pre-transposed so pixels sit on lanes.
        self.w1p = 0.05 * jax.random.normal(k1, (hidden, in_channels), jnp.float32)
        self.w1time = 0.05 * jax.random.normal(k3, (hidden, 1), jnp.float32)
        self.b1 = jnp.zeros((hidden, 1), jnp.float32)
        self.w2 = 0.05 * jax.random.normal(k2, (in_channels, hidden), jnp.float32)
        self.b2 = jnp.zeros((in_channels, 1), jnp.float32)

    def forward(self, x, key):
        """x: (B, C, H, W) float32. Returns scalar MSE loss (Algorithm 18.1)."""
        B = x.shape[0]
        kt, ke = jax.random.split(key)
        # TODO(synk): RNG (randint / randn_like) uses host-side jax.random rather than
        # the in-kernel pltpu PRNG; shapes/ranges match the torch module
        # (torch.randint(1, n_T) -> t in [1, n_T), eps ~ N(0, 1)).
        t = jax.random.randint(kt, (B,), 1, self.n_T)
        eps = jax.random.normal(ke, x.shape, jnp.float32)
        scal = jnp.stack(
            [self.sqrtab[t], self.sqrtmab[t], t.astype(jnp.float32) / self.n_T],
            axis=0,
        )                                                   # (3, B) f32 -> SMEM prefetch
        return ddpm_fused_loss(x, eps, scal, self.w1p, self.w1time,
                               self.b1, self.w2, self.b2)


# ---------------------------------------------------------------------------
if __name__ == "__main__":
    key = jax.random.PRNGKey(0)
    k_param, k_data, k_fwd = jax.random.split(key, 3)

    B, C, H, W = 2, 4, 16, 16
    x = jax.random.normal(k_data, (B, C, H, W), jnp.float32)

    model = DDPM(betas=(1e-4, 0.02), n_T=100, in_channels=C, hidden=32, key=k_param)

    loss = model.forward(x, k_fwd)
    loss = jax.block_until_ready(loss)
    assert loss.shape == () and bool(jnp.isfinite(loss))
    print("KERNEL_OK")
</pallas_src>

<mosaic_0001>
module attributes {stable_mosaic.version = 11 : i64} {
  func.func @_fused_kernel(%arg0: i32, %arg1: i32, %arg2: memref<3x2xf32, #tpu.memory_space<smem>>, %arg3: memref<1x8x256xbf16, #tpu.memory_space<vmem>>, %arg4: memref<1x8x256xbf16, #tpu.memory_space<vmem>>, %arg5: memref<64x8xf32, #tpu.memory_space<vmem>>, %arg6: memref<64x1xf32, #tpu.memory_space<vmem>>, %arg7: memref<64x1xf32, #tpu.memory_space<vmem>>, %arg8: memref<8x64xf32, #tpu.memory_space<vmem>>, %arg9: memref<8x1xf32, #tpu.memory_space<vmem>>, %arg10: memref<1x1xf32, #tpu.memory_space<vmem>>, %arg11: memref<8x256xf32, #tpu.memory_space<vmem>>) attributes {dimension_semantics = [#tpu.dimension_semantics<parallel>, #tpu.dimension_semantics<arbitrary>], iteration_bounds = array<i64: 1, 1>, scalar_prefetch = 1 : i64, scratch_operands = 1 : i64, tpu.core_type = #tpu.core_type<tc>, window_params = [{transform_indices = @transform_0, window_bounds = array<i64: 1, 8, 256>}, {transform_indices = @transform_1, window_bounds = array<i64: 1, 8, 256>}, {pipeline_mode = #tpu.pipeline_mode<synchronous>, transform_indices = @transform_2, window_bounds = array<i64: 64, 8>}, {pipeline_mode = #tpu.pipeline_mode<synchronous>, transform_indices = @transform_3, window_bounds = array<i64: 64, 1>}, {pipeline_mode = #tpu.pipeline_mode<synchronous>, transform_indices = @transform_4, window_bounds = array<i64: 64, 1>}, {pipeline_mode = #tpu.pipeline_mode<synchronous>, transform_indices = @transform_5, window_bounds = array<i64: 8, 64>}, {pipeline_mode = #tpu.pipeline_mode<synchronous>, transform_indices = @transform_6, window_bounds = array<i64: 8, 1>}, {transform_indices = @transform_7, window_bounds = array<i64: 1, 1>}]} {
    %c0_i32 = arith.constant 0 : i32
    %0 = arith.cmpi eq, %arg1, %c0_i32 : i32
    %1 = arith.extui %0 : i1 to i32
    %c0_i32_0 = arith.constant 0 : i32
    %2 = arith.cmpi ne, %1, %c0_i32_0 : i32
    scf.if %2 {
      %cst_32 = arith.constant 0.000000e+00 : f32
      %78 = vector.broadcast %cst_32 : f32 to vector<8x256xf32>
      %c0_33 = arith.constant 0 : index
      %c0_34 = arith.constant 0 : index
      %79 = vector.load %arg11[%c0_33, %c0_34] : memref<8x256xf32, #tpu.memory_space<vmem>>, vector<8x256xf32>
      tpu.vector_store %arg11[%c0_33, %c0_34], %78 {strides = array<i32>} : memref<8x256xf32, #tpu.memory_space<vmem>>, vector<8x256xf32>,
    } else {
    }
    %c2_i32 = arith.constant 2 : i32
    %3 = arith.muli %c2_i32, %arg0 : i32
    %c2_i32_1 = arith.constant 2 : i32
    %4 = arith.muli %c2_i32_1, %arg0 : i32
    %c1_i32 = arith.constant 1 : i32
    %5 = arith.addi %4, %c1_i32 : i32
    %c0 = arith.constant 0 : index
    %6 = arith.index_cast %3 : i32 to index
    %7 = memref.load %arg2[%c0, %6] : memref<3x2xf32, #tpu.memory_space<smem>>
    %c0_2 = arith.constant 0 : index
    %8 = arith.index_cast %5 : i32 to index
    %9 = memref.load %arg2[%c0_2, %8] : memref<3x2xf32, #tpu.memory_space<smem>>
    %c1 = arith.constant 1 : index
    %10 = arith.index_cast %3 : i32 to index
    %11 = memref.load %arg2[%c1, %10] : memref<3x2xf32, #tpu.memory_space<smem>>
    %c1_3 = arith.constant 1 : index
    %12 = arith.index_cast %5 : i32 to index
    %13 = memref.load %arg2[%c1_3, %12] : memref<3x2xf32, #tpu.memory_space<smem>>
    %c2 = arith.constant 2 : index
    %14 = arith.index_cast %3 : i32 to index
    %15 = memref.load %arg2[%c2, %14] : memref<3x2xf32, #tpu.memory_space<smem>>
    %c2_4 = arith.constant 2 : index
    %16 = arith.index_cast %5 : i32 to index
    %17 = memref.load %arg2[%c2_4, %16] : memref<3x2xf32, #tpu.memory_space<smem>>
    %18 = tpu.iota {dimensions = array<i32: 0>} : vector<8x1xi32>
    %c4_i32 = arith.constant 4 : i32
    %19 = vector.broadcast %c4_i32 : i32 to vector<8x1xi32>
    %20 = arith.cmpi slt, %18, %19 : vector<8x1xi32>
    %21 = vector.broadcast %7 : f32 to vector<8x1xf32>
    %22 = vector.broadcast %9 : f32 to vector<8x1xf32>
    %23 = arith.select %20, %21, %22 : vector<8x1xi1>, vector<8x1xf32>
    %24 = vector.broadcast %11 : f32 to vector<8x1xf32>
    %25 = vector.broadcast %13 : f32 to vector<8x1xf32>
    %26 = arith.select %20, %24, %25 : vector<8x1xi1>, vector<8x1xf32>
    %c0_5 = arith.constant 0 : index
    %c0_6 = arith.constant 0 : index
    %c0_7 = arith.constant 0 : index
    %27 = vector.load %arg3[%c0_5, %c0_6, %c0_7] : memref<1x8x256xbf16, #tpu.memory_space<vmem>>, vector<1x8x256xbf16>
    %28 = vector.shape_cast %27 : vector<1x8x256xbf16> to vector<8x256xbf16>
    %29 = arith.extf %28 : vector<8x256xbf16> to vector<8x256xf32>
    %c0_8 = arith.constant 0 : index
    %c0_9 = arith.constant 0 : index
    %c0_10 = arith.constant 0 : index
    %30 = vector.load %arg4[%c0_8, %c0_9, %c0_10] : memref<1x8x256xbf16, #tpu.memory_space<vmem>>, vector<1x8x256xbf16>
    %31 = vector.shape_cast %30 : vector<1x8x256xbf16> to vector<8x256xbf16>
    %32 = arith.extf %31 : vector<8x256xbf16> to vector<8x256xf32>
    %33 = vector.broadcast %23 : vector<8x1xf32> to vector<8x256xf32>
    %34 = arith.mulf %33, %29 : vector<8x256xf32>
    %35 = vector.broadcast %26 : vector<8x1xf32> to vector<8x256xf32>
    %36 = arith.mulf %35, %32 : vector<8x256xf32>
    %37 = arith.addf %34, %36 : vector<8x256xf32>
    %38 = tpu.iota {dimensions = array<i32: 0>} : vector<64x1xi32>
    %c32_i32 = arith.constant 32 : i32
    %39 = vector.broadcast %c32_i32 : i32 to vector<64x1xi32>
    %40 = arith.cmpi slt, %38, %39 : vector<64x1xi32>
    %41 = vector.broadcast %15 : f32 to vector<64x1xf32>
    %42 = vector.broadcast %17 : f32 to vector<64x1xf32>
    %43 = arith.select %40, %41, %42 : vector<64x1xi1>, vector<64x1xf32>
    %c0_11 = arith.constant 0 : index
    %c0_12 = arith.constant 0 : index
    %44 = vector.load %arg7[%c0_11, %c0_12] : memref<64x1xf32, #tpu.memory_space<vmem>>, vector<64x1xf32>
    %c0_13 = arith.constant 0 : index
    %c0_14 = arith.constant 0 : index
    %45 = vector.load %arg6[%c0_13, %c0_14] : memref<64x1xf32, #tpu.memory_space<vmem>>, vector<64x1xf32>
    %46 = arith.mulf %43, %45 : vector<64x1xf32>
    %47 = arith.addf %44, %46 : vector<64x1xf32>
    %c0_15 = arith.constant 0 : index
    %c0_16 = arith.constant 0 : index
    %48 = vector.load %arg5[%c0_15, %c0_16] : memref<64x8xf32, #tpu.memory_space<vmem>>, vector<64x8xf32>
    %cst = arith.constant dense<0.000000e+00> : vector<64x256xf32>
    %49 = tpu.matmul %48, %37, %cst {dimension_numbers = #tpu.dot_dimension_numbers<[1], [0], [0], [1], [0, 0, 1, 1], [], []>} : vector<64x8xf32>, vector<8x256xf32>, vector<64x256xf32> -> vector<64x256xf32>
    %50 = vector.broadcast %47 : vector<64x1xf32> to vector<64x256xf32>
    %51 = arith.addf %49, %50 : vector<64x256xf32>
    %cst_17 = arith.constant 5.000000e-01 : f32
    %52 = vector.broadcast %cst_17 : f32 to vector<64x256xf32>
    %53 = arith.mulf %52, %51 : vector<64x256xf32>
    %cst_18 = arith.constant 4.471500e-02 : f32
    %54 = vector.broadcast %cst_18 : f32 to vector<64x256xf32>
    %55 = arith.mulf %54, %51 : vector<64x256xf32>
    %56 = arith.mulf %55, %51 : vector<64x256xf32>
    %57 = arith.mulf %56, %51 : vector<64x256xf32>
    %58 = arith.addf %51, %57 : vector<64x256xf32>
    %cst_19 = arith.constant 0.797884583 : f32
    %59 = vector.broadcast %cst_19 : f32 to vector<64x256xf32>
    %60 = arith.mulf %59, %58 : vector<64x256xf32>
    %61 = math.tanh %60 : vector<64x256xf32>
    %cst_20 = arith.constant 1.000000e+00 : f32
    %62 = vector.broadcast %cst_20 : f32 to vector<64x256xf32>
    %63 = arith.addf %62, %61 : vector<64x256xf32>
    %64 = arith.mulf %53, %63 : vector<64x256xf32>
    %c0_21 = arith.constant 0 : index
    %c0_22 = arith.constant 0 : index
    %65 = vector.load %arg8[%c0_21, %c0_22] : memref<8x64xf32, #tpu.memory_space<vmem>>, vector<8x64xf32>
    %cst_23 = arith.constant dense<0.000000e+00> : vector<8x256xf32>
    %66 = tpu.matmul %65, %64, %cst_23 {dimension_numbers = #tpu.dot_dimension_numbers<[1], [0], [0], [1], [0, 0, 1, 1], [], []>} : vector<8x64xf32>, vector<64x256xf32>, vector<8x256xf32> -> vector<8x256xf32>
    %c0_24 = arith.constant 0 : index
    %c0_25 = arith.constant 0 : index
    %67 = vector.load %arg9[%c0_24, %c0_25] : memref<8x1xf32, #tpu.memory_space<vmem>>, vector<8x1xf32>
    %68 = vector.broadcast %67 : vector<8x1xf32> to vector<8x256xf32>
    %69 = arith.addf %66, %68 : vector<8x256xf32>
    %70 = arith.subf %32, %69 : vector<8x256xf32>
    %c0_26 = arith.constant 0 : index
    %c0_27 = arith.constant 0 : index
    %71 = vector.load %arg11[%c0_26, %c0_27] : memref<8x256xf32, #tpu.memory_space<vmem>>, vector<8x256xf32>
    %72 = arith.mulf %70, %70 : vector<8x256xf32>
    %73 = arith.addf %71, %72 : vector<8x256xf32>
    %c0_28 = arith.constant 0 : index
    %c0_29 = arith.constant 0 : index
    %74 = vector.load %arg11[%c0_28, %c0_29] : memref<8x256xf32, #tpu.memory_space<vmem>>, vector<8x256xf32>
    tpu.vector_store %arg11[%c0_28, %c0_29], %73 {strides = array<i32>} : memref<8x256xf32, #tpu.memory_space<vmem>>, vector<8x256xf32>,
    %c0_i32_30 = arith.constant 0 : i32
    %75 = arith.cmpi eq, %arg1, %c0_i32_30 : i32
    %76 = arith.extui %75 : i1 to i32
    %c0_i32_31 = arith.constant 0 : i32
    %77 = arith.cmpi ne, %76, %c0_i32_31 : i32
    scf.if %77 {
      %c0_32 = arith.constant 0 : index
      %c0_33 = arith.constant 0 : index
      %78 = vector.load %arg11[%c0_32, %c0_33] : memref<8x256xf32, #tpu.memory_space<vmem>>, vector<8x256xf32>
      %cst_34 = arith.constant dense<0.000000e+00> : vector<8xf32>
      %79 = vector.multi_reduction <add>, %78, %cst_34 [1] : vector<8x256xf32> to vector<8xf32>
      %80 = vector.shape_cast %79 : vector<8xf32> to vector<8x1xf32>
      %cst_35 = arith.constant dense<0.000000e+00> : vector<1xf32>
      %81 = vector.multi_reduction <add>, %80, %cst_35 [0] : vector<8x1xf32> to vector<1xf32>
      %82 = vector.shape_cast %81 : vector<1xf32> to vector<1x1xf32>
      %c0_36 = arith.constant 0 : index
      %c0_37 = arith.constant 0 : index
      %83 = vector.load %arg10[%c0_36, %c0_37] : memref<1x1xf32, #tpu.memory_space<vmem>>, vector<1x1xf32>
      tpu.vector_store %arg10[%c0_36, %c0_37], %82 {strides = array<i32>} : memref<1x1xf32, #tpu.memory_space<vmem>>, vector<1x1xf32>,
    } else {
    }
    return
  }
  func.func @transform_0(%arg0: i32, %arg1: i32, %arg2: memref<3x2xf32, #tpu.memory_space<smem>>) -> (i32, i32, i32) {
    %c0_i32 = arith.constant 0 : i32
    %c0_i32_0 = arith.constant 0 : i32
    return %arg0, %c0_i32, %arg1 : i32, i32, i32
  }
  func.func @transform_1(%arg0: i32, %arg1: i32, %arg2: memref<3x2xf32, #tpu.memory_space<smem>>) -> (i32, i32, i32) {
    %c0_i32 = arith.constant 0 : i32
    %c0_i32_0 = arith.constant 0 : i32
    return %arg0, %c0_i32, %arg1 : i32, i32, i32
  }
  func.func @transform_2(%arg0: i32, %arg1: i32, %arg2: memref<3x2xf32, #tpu.memory_space<smem>>) -> (i32, i32) {
    %c0_i32 = arith.constant 0 : i32
    %c0_i32_0 = arith.constant 0 : i32
    %c0_i32_1 = arith.constant 0 : i32
    return %c0_i32, %c0_i32_0 : i32, i32
  }
  func.func @transform_3(%arg0: i32, %arg1: i32, %arg2: memref<3x2xf32, #tpu.memory_space<smem>>) -> (i32, i32) {
    %c0_i32 = arith.constant 0 : i32
    %c0_i32_0 = arith.constant 0 : i32
    %c0_i32_1 = arith.constant 0 : i32
    return %c0_i32, %c0_i32_0 : i32, i32
  }
  func.func @transform_4(%arg0: i32, %arg1: i32, %arg2: memref<3x2xf32, #tpu.memory_space<smem>>) -> (i32, i32) {
    %c0_i32 = arith.constant 0 : i32
    %c0_i32_0 = arith.constant 0 : i32
    %c0_i32_1 = arith.constant 0 : i32
    return %c0_i32, %c0_i32_0 : i32, i32
  }
  func.func @transform_5(%arg0: i32, %arg1: i32, %arg2: memref<3x2xf32, #tpu.memory_space<smem>>) -> (i32, i32) {
    %c0_i32 = arith.constant 0 : i32
    %c0_i32_0 = arith.constant 0 : i32
    %c0_i32_1 = arith.constant 0 : i32
    return %c0_i32, %c0_i32_0 : i32, i32
  }
  func.func @transform_6(%arg0: i32, %arg1: i32, %arg2: memref<3x2xf32, #tpu.memory_space<smem>>) -> (i32, i32) {
    %c0_i32 = arith.constant 0 : i32
    %c0_i32_0 = arith.constant 0 : i32
    %c0_i32_1 = arith.constant 0 : i32
    return %c0_i32, %c0_i32_0 : i32, i32
  }
  func.func @transform_7(%arg0: i32, %arg1: i32, %arg2: memref<3x2xf32, #tpu.memory_space<smem>>) -> (i32, i32) {
    %c0_i32 = arith.constant 0 : i32
    %c0_i32_0 = arith.constant 0 : i32
    return %arg0, %c0_i32 : i32, i32
  }
}

</mosaic_0001>

<llo_original>
// kernel: tpu_custom_call.1
$region0: #{tpu_custom_call.1}
  #allocation0 [shape = 'u32[]', space=smem, size = 0x4, offset = 0x4, fixed_abs, tag = 'smem constant byte address 0x4 - core index']
  #allocation1 [shape = 'u32[144,128]{1,0:T(1,128)}', space=vmem, size = 0x12000, scoped, tag = 'internal scratch']
  #allocation2 [shape = 'f32[8,256]{1,0:T(8,128)}', space=vmem, size = 0x2000, scoped, tag = 'scratch operand']
  #allocation3 [shape = 's32[1]{0}', space=sflag, size = 0x4, scoped, tag = 'scoped memory for tpu_custom_call.1']
  #allocation4 [shape = 'u8[2048]{0}', space=smem, size = 0x800, scoped, tag = 'prefetched SMEM operand 0']
  %s0 = inlined_call_operand.vmem [shape: f32[3,2], index: 0, kind: input, shape index: {}]
  %s1 = inlined_call_operand.vmem [shape: bf16[1,8,256], index: 1, kind: input, shape index: {}]
  %s2 = inlined_call_operand.vmem [shape: bf16[1,8,256], index: 2, kind: input, shape index: {}]
  %s3 = inlined_call_operand.vmem [shape: f32[64,8], index: 3, kind: input, shape index: {}]
  %s4 = inlined_call_operand.vmem [shape: f32[64,1], index: 4, kind: input, shape index: {}]
  %s5 = inlined_call_operand.vmem [shape: f32[64,1], index: 5, kind: input, shape index: {}]
  %s6 = inlined_call_operand.vmem [shape: f32[8,64], index: 6, kind: input, shape index: {}]
  %s7 = inlined_call_operand.vmem [shape: f32[8,1], index: 7, kind: input, shape index: {}]
  %s8 = inlined_call_operand.hbm [shape: f32[1,1], index: 8, kind: output, shape index: {}]
  %s9 = sld [smem:[#allocation0]]
  $region46: #{tpu_custom_call.1} parent=0
    _
  %s11 = ssub.s32 1, %s9
  %s12 = scalar_select 0, %s11, %s9
  %s13 = sshll.u32 %s0, 4
  %s14 = int_to_ptr.vmem [resolvable:$true] %s13
  %16 = dma.vmem_to_smem %s14, 64, [#allocation4], [#allocation3]
  %17 = dma.done [#allocation3], 64
  %18 = sfence
  $region1: #{tpu_custom_call.1} parent=0
    #allocation5 [shape = 'u8[512]{0}', space=vmem, size = 0x400, scoped, tag = 'output window, operand 0, single buffered']
    #allocation6 [shape = 's32[1]{0}', space=sflag, size = 0x4, scoped, tag = 'scoped memory for tpu_custom_call.1']
    %19 = vsyncpa [#allocation6], 0
    // Predicated region
    $region2: #{tpu_custom_call.1} parent=1 // pred_check
      _
    $region3: #{tpu_custom_call.1} parent=1 // pred_check_branch
      %21 = sbr.rel (0) target = $region5
    $region4: #{tpu_custom_call.1} parent=1 // pred_region
      _
    $region5: #{tpu_custom_call.1} parent=1 // pred_fallthru
      _
    // Predicated region
    $region6: #{tpu_custom_call.1} parent=1 // pred_check
      _
    $region7: #{tpu_custom_call.1} parent=1 // pred_check_branch
      %23 = sbr.rel (0) target = $region9
    $region8: #{tpu_custom_call.1} parent=1 // pred_region
      _
    $region9: #{tpu_custom_call.1} parent=1 // pred_fallthru
      _
    // Predicated region
    $region10: #{tpu_custom_call.1} parent=1 // pred_check
      _
    $region11: #{tpu_custom_call.1} parent=1 // pred_check_branch
      %25 = sbr.rel (0) target = $region13
    $region12: #{tpu_custom_call.1} parent=1 // pred_region
      _
    $region13: #{tpu_custom_call.1} parent=1 // pred_fallthru
      _
    // Predicated region
    $region14: #{tpu_custom_call.1} parent=1 // pred_check
      _
    $region15: #{tpu_custom_call.1} parent=1 // pred_check_branch
      %27 = sbr.rel (0) target = $region17
    $region16: #{tpu_custom_call.1} parent=1 // pred_region
      _
    $region17: #{tpu_custom_call.1} parent=1 // pred_fallthru
      _
    // Predicated region
    $region18: #{tpu_custom_call.1} parent=1 // pred_check
      _
    $region19: #{tpu_custom_call.1} parent=1 // pred_check_branch
      %29 = sbr.rel (0) target = $region21
    $region20: #{tpu_custom_call.1} parent=1 // pred_region
      _
    $region21: #{tpu_custom_call.1} parent=1 // pred_fallthru
      _
    // Predicated region
    $region22: #{tpu_custom_call.1} parent=1 // pred_check
      _
    $region23: #{tpu_custom_call.1} parent=1 // pred_check_branch
      %31 = sbr.rel (0) target = $region25
    $region24: #{tpu_custom_call.1} parent=1 // pred_region
      _
    $region25: #{tpu_custom_call.1} parent=1 // pred_fallthru
      _
    // Predicated region
    $region26: #{tpu_custom_call.1} parent=1 // pred_check
      _
    $region27: #{tpu_custom_call.1} parent=1 // pred_check_branch
      %33 = sbr.rel (0) target = $region29
    $region28: #{tpu_custom_call.1} parent=1 // pred_region
      _
    $region29: #{tpu_custom_call.1} parent=1 // pred_fallthru
      _
    %p34 = scmp.eq.s32.totalorder 0, 0
    // Predicated region
    $region30: #{tpu_custom_call.1} parent=1 // pred_check
      %p35 = pneg %p34
    $region31: #{tpu_custom_call.1} parent=1 // pred_check_branch
      %37 = sbr.rel (%p35) target = $region33
    $region32: #{tpu_custom_call.1} parent=1 // pred_region
      %38 = vst [vmem:[#allocation2] sm:$0xff] 0.0
      %39 = vst [vmem:[#allocation2 + $0x8] sm:$0xff] 0.0
    $region33: #{tpu_custom_call.1} parent=1 // pred_fallthru
      _
    %s40 = smul.u32 0, 2
    %s41 = sadd.s32 %s40, 1
    %s42 = sld [smem:[#allocation4 + %s40]]
    %s43 = sld [smem:[#allocation4 + %s41]]
    %s44 = sshra.s32 %s40, 7
    %s45 = sand.u32 %s40, 127
    %s46 = sadd.s32 %s44, 1
    %s47 = smul.u32 %s46, 128
    %s48 = sshra.s32 %s40, 7
    %s49 = sand.u32 %s40, 127
    %s50 = sadd.s32 %s47, %s49
    %s51 = sld [smem:[#allocation4 + %s50]]
    %s52 = sshra.s32 %s41, 7
    %s53 = sand.u32 %s41, 127
    %s54 = sadd.s32 %s52, 1
    %s55 = smul.u32 %s54, 128
    %s56 = sshra.s32 %s41, 7
    %s57 = sand.u32 %s41, 127
    %s58 = sadd.s32 %s55, %s57
    %s59 = sld [smem:[#allocation4 + %s58]]
    %s60 = sadd.s32 %s44, 2
    %s61 = smul.u32 %s60, 128
    %s62 = sadd.s32 %s61, %s49
    %s63 = sld [smem:[#allocation4 + %s62]]
    %s64 = sadd.s32 %s52, 2
    %s65 = smul.u32 %s64, 128
    %s66 = sadd.s32 %s65, %s57
    %s67 = sld [smem:[#allocation4 + %s66]]
    %v68 = vlaneseq
    %v69 = vshrl.u32 %v68, 7
    %vm70 = vcmp.lt.s32.totalorder %v69, 4
    %v71 = vstv %s42
    %v72 = vstv %s43
    %v73 = vsel %vm70, %v71, %v72
    %v74 = vstv %s51
    %v75 = vstv %s59
    %v76 = vsel %vm70, %v74, %v75
    %v77 = vld [vmem:[%s1] sm:$0xff]
    %v78 = vunpack.c.l.bf16 %v77
    %v79 = vunpack.c.h.bf16 %v77
    %v80 = vld [vmem:[%s2] sm:$0xff]
    %v81 = vunpack.c.l.bf16 %v80
    %v82 = vunpack.c.h.bf16 %v80
    %v83 = vmul.f32 %v73, %v78
    %v84 = vmul.f32 %v73, %v79
    %v85 = vmul.f32 %v76, %v81
    %v86 = vmul.f32 %v76, %v82
    %v87 = vadd.f32 %v83, %v85
    %v88 = vadd.f32 %v84, %v86
    %v89 = vadd.s32 %v69, 8
    %v90 = vadd.s32 %v69, 16
    %v91 = vadd.s32 %v69, 24
    %v92 = vadd.s32 %v69, 32
    %v93 = vadd.s32 %v69, 40
    %v94 = vadd.s32 %v69, 48
    %v95 = vadd.s32 %v69, 56
    %vm96 = vcmp.lt.s32.totalorder %v69, 32
    %vm97 = vcmp.lt.s32.totalorder %v89, 32
    %vm98 = vcmp.lt.s32.totalorder %v90, 32
    %vm99 = vcmp.lt.s32.totalorder %v91, 32
    %vm100 = vcmp.lt.s32.totalorder %v92, 32
    %vm101 = vcmp.lt.s32.totalorder %v93, 32
    %vm102 = vcmp.lt.s32.totalorder %v94, 32
    %vm103 = vcmp.lt.s32.totalorder %v95, 32
    %v104 = vstv %s63
    %v105 = vstv %s67
    %v106 = vsel %vm96, %v104, %v105
    %v107 = vsel %vm97, %v104, %v105
    %v108 = vsel %vm98, %v104, %v105
    %v109 = vsel %vm99, %v104, %v105
    %v110 = vsel %vm100, %v104, %v105
    %v111 = vsel %vm101, %v104, %v105
    %v112 = vsel %vm102, %v104, %v105
    %v113 = vsel %vm103, %v104, %v105
    %v114 = vld [vmem:[%s5] sm:$0xff]
    %v115 = vld [vmem:[%s5 + $0x8] sm:$0xff]
    %v116 = vld [vmem:[%s5 + $0x10] sm:$0xff]
    %v117 = vld [vmem:[%s5 + $0x18] sm:$0xff]
    %v118 = vld [vmem:[%s5 + $0x20] sm:$0xff]
    %v119 = vld [vmem:[%s5 + $0x28] sm:$0xff]
    %v120 = vld [vmem:[%s5 + $0x30] sm:$0xff]
    %v121 = vld [vmem:[%s5 + $0x38] sm:$0xff]
    %v122 = vld [vmem:[%s4] sm:$0xff]
    %v123 = vld [vmem:[%s4 + $0x8] sm:$0xff]
    %v124 = vld [vmem:[%s4 + $0x10] sm:$0xff]
    %v125 = vld [vmem:[%s4 + $0x18] sm:$0xff]
    %v126 = vld [vmem:[%s4 + $0x20] sm:$0xff]
    %v127 = vld [vmem:[%s4 + $0x28] sm:$0xff]
    %v128 = vld [vmem:[%s4 + $0x30] sm:$0xff]
    %v129 = vld [vmem:[%s4 + $0x38] sm:$0xff]
    %v130 = vmul.f32 %v106, %v122
    %v131 = vmul.f32 %v107, %v123
    %v132 = vmul.f32 %v108, %v124
    %v133 = vmul.f32 %v109, %v125
    %v134 = vmul.f32 %v110, %v126
    %v135 = vmul.f32 %v111, %v127
    %v136 = vmul.f32 %v112, %v128
    %v137 = vmul.f32 %v113, %v129
    %v138 = vadd.f32 %v114, %v130
    %v139 = vadd.f32 %v115, %v131
    %v140 = vadd.f32 %v116, %v132
    %v141 = vadd.f32 %v117, %v133
    %v142 = vadd.f32 %v118, %v134
    %v143 = vadd.f32 %v119, %v135
    %v144 = vadd.f32 %v120, %v136
    %v145 = vadd.f32 %v121, %v137
    %v146 = vld [vmem:[%s3] sm:$0xff]
    %v147 = vld [vmem:[%s3 + $0x8] sm:$0xff]
    %v148 = vld [vmem:[%s3 + $0x10] sm:$0xff]
    %v149 = vld [vmem:[%s3 + $0x18] sm:$0xff]
    %v150 = vld [vmem:[%s3 + $0x20] sm:$0xff]
    %v151 = vld [vmem:[%s3 + $0x28] sm:$0xff]
    %v152 = vld [vmem:[%s3 + $0x30] sm:$0xff]
    %v153 = vld [vmem:[%s3 + $0x38] sm:$0xff]
    %155 = vset.pattern.permute.xlu0 0
    %156 = vperm.xlu0 %155, %v138
    %v157 = vpop.permute.xlu0 %156
    %160 = vset.pattern.permute.xlu0 0
    %161 = vperm.xlu0 %160, %v139
    %v162 = vpop.permute.xlu0 %161
    %165 = vset.pattern.permute.xlu0 0
    %166 = vperm.xlu0 %165, %v140
    %v167 = vpop.permute.xlu0 %166
    %170 = vset.pattern.permute.xlu0 0
    %171 = vperm.xlu0 %170, %v141
    %v172 = vpop.permute.xlu0 %171
    %175 = vset.pattern.permute.xlu0 0
    %176 = vperm.xlu0 %175, %v142
    %v177 = vpop.permute.xlu0 %176
    %180 = vset.pattern.permute.xlu0 0
    %181 = vperm.xlu0 %180, %v143
    %v182 = vpop.permute.xlu0 %181
    %185 = vset.pattern.permute.xlu0 0
    %186 = vperm.xlu0 %185, %v144
    %v187 = vpop.permute.xlu0 %186
    %190 = vset.pattern.permute.xlu0 0
    %191 = vperm.xlu0 %190, %v145
    %v192 = vpop.permute.xlu0 %191
    %vm194 = vcmask 64512
    %v196 = vsel %vm194, %v146, 0
    %v199 = vsel %vm194, %v147, 0
    %v202 = vsel %vm194, %v148, 0
    %v205 = vsel %vm194, %v149, 0
    %v208 = vsel %vm194, %v150, 0
    %v211 = vsel %vm194, %v151, 0
    %v214 = vsel %vm194, %v152, 0
    %v217 = vsel %vm194, %v153, 0
    %219 = vmatprep.subr.mxu0 %v88
    %220 = vmatpush1.msra.mxu0 %v87
    %221 = vmatprep.subr.mxu0 0.0
    %222 = vmatpush1.msra.mxu0 0.0
    %223 = vmatprep.subr.mxu0 0.0
    %224 = vmatpush1.msra.mxu0 0.0
    %225 = vmatprep.subr.mxu0 0.0
    %226 = vmatpush1.msra.mxu0 0.0
    %227 = vmatprep.subr.mxu0 0.0
    %228 = vmatpush1.msra.mxu0 0.0
    %229 = vmatprep.subr.mxu0 0.0
    %230 = vmatpush1.msra.mxu0 0.0
    %231 = vmatprep.subr.mxu0 0.0
    %232 = vmatpush1.msra.mxu0 0.0
    %233 = vmatprep.subr.mxu0 0.0
    %234 = vmatpush1.msra.mxu0 0.0
    %235 = vmatprep.subr.mxu0 0.0
    %236 = vmatpush1.msra.mxu0 0.0
    %237 = vmatprep.subr.mxu0 0.0
    %238 = vmatpush1.msra.mxu0 0.0
    %239 = vmatprep.subr.mxu0 0.0
    %240 = vmatpush1.msra.mxu0 0.0
    %241 = vmatprep.subr.mxu0 0.0
    %242 = vmatpush1.msra.mxu0 0.0
    %243 = vmatprep.subr.mxu0 0.0
    %244 = vmatpush1.msra.mxu0 0.0
    %245 = vmatprep.subr.mxu0 0.0
    %246 = vmatpush1.msra.mxu0 0.0
    %247 = vmatprep.subr.mxu0 0.0
    %248 = vmatpush1.msra.mxu0 0.0
    %249 = vmatprep.subr.mxu0 0.0
    %250 = vmatpush1.msra.mxu0 0.0
    %251 = vmatprep.subr.mxu0 0.0
    %252 = vmatpush1.msra.mxu0 0.0
    %253 = vmatprep.subr.mxu0 0.0
    %254 = vmatpush1.msra.mxu0 0.0
    %255 = vmatprep.subr.mxu0 0.0
    %256 = vmatpush1.msra.mxu0 0.0
    %257 = vmatprep.subr.mxu0 0.0
    %258 = vmatpush1.msra.mxu0 0.0
    %259 = vmatprep.subr.mxu0 0.0
    %260 = vmatpush1.msra.mxu0 0.0
    %261 = vmatprep.subr.mxu0 0.0
    %262 = vmatpush1.msra.mxu0 0.0
    %263 = vmatprep.subr.mxu0 0.0
    %264 = vmatpush1.msra.mxu0 0.0
    %265 = vmatprep.subr.mxu0 0.0
    %266 = vmatpush1.msra.mxu0 0.0
    %267 = vmatprep.subr.mxu0 0.0
    %268 = vmatpush1.msra.mxu0 0.0
    %269 = vmatprep.subr.mxu0 0.0
    %270 = vmatpush1.msra.mxu0 0.0
    %271 = vmatprep.subr.mxu0 0.0
    %272 = vmatpush1.msra.mxu0 0.0
    %273 = vmatprep.subr.mxu0 0.0
    %274 = vmatpush1.msra.mxu0 0.0
    %275 = vmatprep.subr.mxu0 0.0
    %276 = vmatpush1.msra.mxu0 0.0
    %277 = vmatprep.subr.mxu0 0.0
    %278 = vmatpush1.msra.mxu0 0.0
    %279 = vmatprep.subr.mxu0 0.0
    %280 = vmatpush1.msra.mxu0 0.0
    %281 = vmatprep.subr.mxu0 0.0
    %282 = vmatpush1.msra.mxu0 0.0
    %283 = vmatprep.mubr.f32.mxu0 0.0
    %284 = vmatmul.mubr.f32.gmra.mrb[0].mxu0 %v196
    %v285 = vpop.f32.mrb[0].mxu0
    %v286 = vadd.f32 %v157, %v285
    %v287 = vpop.f32.mrb[0].mxu0
    %v288 = vadd.f32 %v157, %v287
    %289 = vmatprep.mubr.f32.mxu0 0.0
    %290 = vmatmul.mubr.f32.gmra.mrb[0].mxu0 %v199
    %v291 = vpop.f32.mrb[0].mxu0
    %v292 = vadd.f32 %v162, %v291
    %v293 = vpop.f32.mrb[0].mxu0
    %v294 = vadd.f32 %v162, %v293
    %295 = vmatprep.mubr.f32.mxu0 0.0
    %296 = vmatmul.mubr.f32.gmra.mrb[0].mxu0 %v202
    %v297 = vpop.f32.mrb[0].mxu0
    %v298 = vadd.f32 %v167, %v297
    %v299 = vpop.f32.mrb[0].mxu0
    %v300 = vadd.f32 %v167, %v299
    %301 = vmatprep.mubr.f32.mxu0 0.0
    %302 = vmatmul.mubr.f32.gmra.mrb[0].mxu0 %v205
    %v303 = vpop.f32.mrb[0].mxu0
    %v304 = vadd.f32 %v172, %v303
    %v305 = vpop.f32.mrb[0].mxu0
    %v306 = vadd.f32 %v172, %v305
    %307 = vmatprep.mubr.f32.mxu0 0.0
    %308 = vmatmul.mubr.f32.gmra.mrb[0].mxu0 %v208
    %v309 = vpop.f32.mrb[0].mxu0
    %v310 = vadd.f32 %v177, %v309
    %v311 = vpop.f32.mrb[0].mxu0
    %v312 = vadd.f32 %v177, %v311
    %313 = vmatprep.mubr.f32.mxu0 0.0
    %314 = vmatmul.mubr.f32.gmra.mrb[0].mxu0 %v211
    %v315 = vpop.f32.mrb[0].mxu0
    %v316 = vadd.f32 %v182, %v315
    %v317 = vpop.f32.mrb[0].mxu0
    %v318 = vadd.f32 %v182, %v317
    %319 = vmatprep.mubr.f32.mxu0 0.0
    %320 = vmatmul.mubr.f32.gmra.mrb[0].mxu0 %v214
    %v321 = vpop.f32.mrb[0].mxu0
    %v322 = vadd.f32 %v187, %v321
    %v323 = vpop.f32.mrb[0].mxu0
    %v324 = vadd.f32 %v187, %v323
    %325 = vmatprep.mubr.f32.mxu0 0.0
    %326 = vmatmul.mubr.f32.gmra.mrb[0].mxu0 %v217
    %v327 = vpop.f32.mrb[0].mxu0
    %v328 = vadd.f32 %v192, %v327
    %v329 = vpop.f32.mrb[0].mxu0
    %v330 = vadd.f32 %v192, %v329
    %331 = vdwg.mxu0
    %v332 = vmul.f32 %v286, 0.5
    %v333 = vmul.f32 %v288, 0.5
    %v334 = vmul.f32 %v292, 0.5
    %v335 = vmul.f32 %v294, 0.5
    %v336 = vmul.f32 %v298, 0.5
    %v337 = vmul.f32 %v300, 0.5
    %v338 = vmul.f32 %v304, 0.5
    %v339 = vmul.f32 %v306, 0.5
    %v340 = vmul.f32 %v310, 0.5
    %v341 = vmul.f32 %v312, 0.5
    %v342 = vmul.f32 %v316, 0.5
    %v343 = vmul.f32 %v318, 0.5
    %v344 = vmul.f32 %v322, 0.5
    %v345 = vmul.f32 %v324, 0.5
    %v346 = vmul.f32 %v328, 0.5
    %v347 = vmul.f32 %v330, 0.5
    %v348 = vmul.f32 %v286, 0.044715
    %v349 = vmul.f32 %v288, 0.044715
    %v350 = vmul.f32 %v292, 0.044715
    %v351 = vmul.f32 %v294, 0.044715
    %v352 = vmul.f32 %v298, 0.044715
    %v353 = vmul.f32 %v300, 0.044715
    %v354 = vmul.f32 %v304, 0.044715
    %v355 = vmul.f32 %v306, 0.044715
    %v356 = vmul.f32 %v310, 0.044715
    %v357 = vmul.f32 %v312, 0.044715
    %v358 = vmul.f32 %v316, 0.044715
    %v359 = vmul.f32 %v318, 0.044715
    %v360 = vmul.f32 %v322, 0.044715
    %v361 = vmul.f32 %v324, 0.044715
    %v362 = vmul.f32 %v328, 0.044715
    %v363 = vmul.f32 %v330, 0.044715
    %v364 = vmul.f32 %v348, %v286
    %v365 = vmul.f32 %v349, %v288
    %v366 = vmul.f32 %v350, %v292
    %v367 = vmul.f32 %v351, %v294
    %v368 = vmul.f32 %v352, %v298
    %v369 = vmul.f32 %v353, %v300
    %v370 = vmul.f32 %v354, %v304
    %v371 = vmul.f32 %v355, %v306
    %v372 = vmul.f32 %v356, %v310
    %v373 = vmul.f32 %v357, %v312
    %v374 = vmul.f32 %v358, %v316
    %v375 = vmul.f32 %v359, %v318
    %v376 = vmul.f32 %v360, %v322
    %v377 = vmul.f32 %v361, %v324
    %v378 = vmul.f32 %v362, %v328
    %v379 = vmul.f32 %v363, %v330
    %v380 = vmul.f32 %v364, %v286
    %v381 = vmul.f32 %v365, %v288
    %v382 = vmul.f32 %v366, %v292
    %v383 = vmul.f32 %v367, %v294
    %v384 = vmul.f32 %v368, %v298
    %v385 = vmul.f32 %v369, %v300
    %v386 = vmul.f32 %v370, %v304
    %v387 = vmul.f32 %v371, %v306
    %v388 = vmul.f32 %v372, %v310
    %v389 = vmul.f32 %v373, %v312
    %v390 = vmul.f32 %v374, %v316
    %v391 = vmul.f32 %v375, %v318
    %v392 = vmul.f32 %v376, %v322
    %v393 = vmul.f32 %v377, %v324
    %v394 = vmul.f32 %v378, %v328
    %v395 = vmul.f32 %v379, %v330
    %v396 = vadd.f32 %v286, %v380
    %v397 = vadd.f32 %v288, %v381
    %v398 = vadd.f32 %v292, %v382
    %v399 = vadd.f32 %v294, %v383
    %v400 = vadd.f32 %v298, %v384
    %v401 = vadd.f32 %v300, %v385
    %v402 = vadd.f32 %v304, %v386
    %v403 = vadd.f32 %v306, %v387
    %v404 = vadd.f32 %v310, %v388
    %v405 = vadd.f32 %v312, %v389
    %v406 = vadd.f32 %v316, %v390
    %v407 = vadd.f32 %v318, %v391
    %v408 = vadd.f32 %v322, %v392
    %v409 = vadd.f32 %v324, %v393
    %v410 = vadd.f32 %v328, %v394
    %v411 = vadd.f32 %v330, %v395
    %v412 = vmul.f32 %v396, 0.7978846
    %v413 = vmul.f32 %v397, 0.7978846
    %v414 = vmul.f32 %v398, 0.7978846
    %v415 = vmul.f32 %v399, 0.7978846
    %v416 = vmul.f32 %v400, 0.7978846
    %v417 = vmul.f32 %v401, 0.7978846
    %v418 = vmul.f32 %v402, 0.7978846
    %v419 = vmul.f32 %v403, 0.7978846
    %v420 = vmul.f32 %v404, 0.7978846
    %v421 = vmul.f32 %v405, 0.7978846
    %v422 = vmul.f32 %v406, 0.7978846
    %v423 = vmul.f32 %v407, 0.7978846
    %v424 = vmul.f32 %v408, 0.7978846
    %v425 = vmul.f32 %v409, 0.7978846
    %v426 = vmul.f32 %v410, 0.7978846
    %v427 = vmul.f32 %v411, 0.7978846
    %v428 = vtanh.pop %v412
    %v429 = vtanh.pop %v413
    %v430 = vtanh.pop %v414
    %v431 = vtanh.pop %v415
    %v432 = vtanh.pop %v416
    %v433 = vtanh.pop %v417
    %v434 = vtanh.pop %v418
    %v435 = vtanh.pop %v419
    %v436 = vtanh.pop %v420
    %v437 = vtanh.pop %v421
    %v438 = vtanh.pop %v422
    %v439 = vtanh.pop %v423
    %v440 = vtanh.pop %v424
    %v441 = vtanh.pop %v425
    %v442 = vtanh.pop %v426
    %v443 = vtanh.pop %v427
    %v444 = vadd.f32 %v428, 1.0
    %v445 = vadd.f32 %v429, 1.0
    %v446 = vadd.f32 %v430, 1.0
    %v447 = vadd.f32 %v431, 1.0
    %v448 = vadd.f32 %v432, 1.0
    %v449 = vadd.f32 %v433, 1.0
    %v450 = vadd.f32 %v434, 1.0
    %v451 = vadd.f32 %v435, 1.0
    %v452 = vadd.f32 %v436, 1.0
    %v453 = vadd.f32 %v437, 1.0
    %v454 = vadd.f32 %v438, 1.0
    %v455 = vadd.f32 %v439, 1.0
    %v456 = vadd.f32 %v440, 1.0
    %v457 = vadd.f32 %v441, 1.0
    %v458 = vadd.f32 %v442, 1.0
    %v459 = vadd.f32 %v443, 1.0
    %v460 = vmul.f32 %v332, %v444
    %v461 = vmul.f32 %v333, %v445
    %v462 = vmul.f32 %v334, %v446
    %v463 = vmul.f32 %v335, %v447
    %v464 = vmul.f32 %v336, %v448
    %v465 = vmul.f32 %v337, %v449
    %v466 = vmul.f32 %v338, %v450
    %v467 = vmul.f32 %v339, %v451
    %v468 = vmul.f32 %v340, %v452
    %v469 = vmul.f32 %v341, %v453
    %v470 = vmul.f32 %v342, %v454
    %v471 = vmul.f32 %v343, %v455
    %v472 = vmul.f32 %v344, %v456
    %v473 = vmul.f32 %v345, %v457
    %v474 = vmul.f32 %v346, %v458
    %v475 = vmul.f32 %v347, %v459
    %v476 = vld [vmem:[%s6] sm:$0xff]
    %v477 = vld [vmem:[%s7] sm:$0xff]
    %479 = vset.pattern.permute.xlu0 0
    %480 = vperm.xlu0 %479, %v477
    %v481 = vpop.permute.xlu0 %480
    %vm483 = vcmask 523264
    %v485 = vsel %vm483, %v476, 0
    %487 = vmatprep.subr.mxu0 %v461
    %488 = vmatpush1.msra.mxu0 %v460
    %489 = vmatprep.subr.mxu0 %v463
    %490 = vmatpush1.msra.mxu0 %v462
    %491 = vmatprep.subr.mxu0 %v465
    %492 = vmatpush1.msra.mxu0 %v464
    %493 = vmatprep.subr.mxu0 %v467
    %494 = vmatpush1.msra.mxu0 %v466
    %495 = vmatprep.subr.mxu0 %v469
    %496 = vmatpush1.msra.mxu0 %v468
    %497 = vmatprep.subr.mxu0 %v471
    %498 = vmatpush1.msra.mxu0 %v470
    %499 = vmatprep.subr.mxu0 %v473
    %500 = vmatpush1.msra.mxu0 %v472
    %501 = vmatprep.subr.mxu0 %v475
    %502 = vmatpush1.msra.mxu0 %v474
    %503 = vmatprep.subr.mxu0 0.0
    %504 = vmatpush1.msra.mxu0 0.0
    %505 = vmatprep.subr.mxu0 0.0
    %506 = vmatpush1.msra.mxu0 0.0
    %507 = vmatprep.subr.mxu0 0.0
    %508 = vmatpush1.msra.mxu0 0.0
    %509 = vmatprep.subr.mxu0 0.0
    %510 = vmatpush1.msra.mxu0 0.0
    %511 = vmatprep.subr.mxu0 0.0
    %512 = vmatpush1.msra.mxu0 0.0
    %513 = vmatprep.subr.mxu0 0.0
    %514 = vmatpush1.msra.mxu0 0.0
    %515 = vmatprep.subr.mxu0 0.0
    %516 = vmatpush1.msra.mxu0 0.0
    %517 = vmatprep.subr.mxu0 0.0
    %518 = vmatpush1.msra.mxu0 0.0
    %519 = vmatprep.subr.mxu0 0.0
    %520 = vmatpush1.msra.mxu0 0.0
    %521 = vmatprep.subr.mxu0 0.0
    %522 = vmatpush1.msra.mxu0 0.0
    %523 = vmatprep.subr.mxu0 0.0
    %524 = vmatpush1.msra.mxu0 0.0
    %525 = vmatprep.subr.mxu0 0.0
    %526 = vmatpush1.msra.mxu0 0.0
    %527 = vmatprep.subr.mxu0 0.0
    %528 = vmatpush1.msra.mxu0 0.0
    %529 = vmatprep.subr.mxu0 0.0
    %530 = vmatpush1.msra.mxu0 0.0
    %531 = vmatprep.subr.mxu0 0.0
    %532 = vmatpush1.msra.mxu0 0.0
    %533 = vmatprep.subr.mxu0 0.0
    %534 = vmatpush1.msra.mxu0 0.0
    %535 = vmatprep.subr.mxu0 0.0
    %536 = vmatpush1.msra.mxu0 0.0
    %537 = vmatprep.subr.mxu0 0.0
    %538 = vmatpush1.msra.mxu0 0.0
    %539 = vmatprep.subr.mxu0 0.0
    %540 = vmatpush1.msra.mxu0 0.0
    %541 = vmatprep.subr.mxu0 0.0
    %542 = vmatpush1.msra.mxu0 0.0
    %543 = vmatprep.subr.mxu0 0.0
    %544 = vmatpush1.msra.mxu0 0.0
    %545 = vmatprep.subr.mxu0 0.0
    %546 = vmatpush1.msra.mxu0 0.0
    %547 = vmatprep.subr.mxu0 0.0
    %548 = vmatpush1.msra.mxu0 0.0
    %549 = vmatprep.subr.mxu0 0.0
    %550 = vmatpush1.msra.mxu0 0.0
    %551 = vmatprep.mubr.f32.mxu0 0.0
    %552 = vmatmul.mubr.f32.gmra.mrb[0].mxu0 %v485
    %v553 = vpop.f32.mrb[0].mxu0
    %v554 = vadd.f32 %v481, %v553
    %v555 = vpop.f32.mrb[0].mxu0
    %v556 = vadd.f32 %v481, %v555
    %557 = vdwg.mxu0
    %v558 = vsub.f32 %v81, %v554
    %v559 = vsub.f32 %v82, %v556
    %v560 = vld [vmem:[#allocation2] sm:$0xff]
    %v561 = vld [vmem:[#allocation2 + $0x8] sm:$0xff]
    %v562 = vmul.f32 %v558, %v558
    %v563 = vmul.f32 %v559, %v559
    %v564 = vadd.f32 %v560, %v562
    %v565 = vadd.f32 %v561, %v563
    %566 = vst [vmem:[#allocation2] sm:$0xff] %v564
    %567 = vst [vmem:[#allocation2 + $0x8] sm:$0xff] %v565
    // Predicated region
    $region34: #{tpu_custom_call.1} parent=1 // pred_check
      %p568 = pneg %p34
    $region35: #{tpu_custom_call.1} parent=1 // pred_check_branch
      %570 = sbr.rel (%p568) target = $region37
    $region36: #{tpu_custom_call.1} parent=1 // pred_region
      %v571 = vld [vmem:[#allocation2] sm:$0xff]
      %v572 = vld [vmem:[#allocation2 + $0x8] sm:$0xff]
      %v573 = vadd.f32 %v571, %v572
      %574 = vadd.xlane.f32.xlu0 %v573
      %v575 = vpop.xlane.xlu0 %574
      %v576 = vrot.slane %v575, 4
      %v577 = vadd.f32 %v575, %v576
      %v578 = vrot.slane %v577, 2
      %v579 = vadd.f32 %v577, %v578
      %v580 = vrot.slane %v579, 1
      %v581 = vadd.f32 %v579, %v580
      %vm582 = vcmask 0
      %583 = vst.msk [vmem:[#allocation5] sm:$0x1] %vm582, %v581
    $region37: #{tpu_custom_call.1} parent=1 // pred_fallthru
      _
    // Predicated region
    $region38: #{tpu_custom_call.1} parent=1 // pred_check
      _
    $region39: #{tpu_custom_call.1} parent=1 // pred_check_branch
      %585 = sbr.rel (0) target = $region41
    $region40: #{tpu_custom_call.1} parent=1 // pred_region
      %s587 = ssub.s32 16, 16
      %588 = vsyncadd [#allocation6], %s587
      %s590 = sshll.u32 [#allocation5], 4
      %s591 = int_to_ptr.vmem [resolvable:$true] %s590
      %593 = dma.vmem_to_hbm [thread:$0]  %s591, 16, %s8, [#allocation6]
    $region41: #{tpu_custom_call.1} parent=1 // pred_fallthru
      _
    // Predicated region
    $region42: #{tpu_custom_call.1} parent=1 // pred_check
      _
    $region43: #{tpu_custom_call.1} parent=1 // pred_check_branch
      %595 = sbr.rel (0) target = $region45
    $region44: #{tpu_custom_call.1} parent=1 // pred_region
      %596 = dma.done [#allocation6], 16
    $region45: #{tpu_custom_call.1} parent=1 // pred_fallthru
      _
    %597 = vsyncpa [#allocation6], 1

</llo_original>
